<compile_context>
chip_gen: v7x
topology: tpu7x:2x2x1
jax: 0.10.0
libtpu: 0.0.40
codegen_flags: <defaults>
</compile_context>

<pallas_src>
import jax
import jax.numpy as jnp
from jax.experimental import pallas as pl
from jax.experimental.pallas import tpu as pltpu

LANE = 128  # lane width / padded feature & hidden width


# ------------------------------ fused kernel -------------------------------

def _fused_forward_kernel(img_ref, txt_ref, hate_ref,
                          wi_ref, wt_ref, wh_ref,
                          w1_ref, b1_ref, w2_ref, b2_ref, w3_ref, b3_ref,
                          o_ref):
    f32 = jnp.float32

    img = img_ref[...].astype(f32)     # (B, C*H*W)  -- GAP folded into wi
    txt = txt_ref[...].astype(f32)     # (B, S*D)    -- seq-mean folded into wt
    hate = hate_ref[...].astype(f32)   # (B, HATE)

    # "concat" of modalities = sum of matmuls into disjoint lane ranges of a
    # lane-dense (B, 128) feature tile.
    # TODO(synk): real image_feat_model / text_feat_model are external
    # backbones (CNN / transformer); the stand-ins here are GAP+linear and a
    # per-token linear, with the pooling folded into the weights at init.
    feat = (jnp.dot(img, wi_ref[...], preferred_element_type=f32)
            + jnp.dot(txt, wt_ref[...], preferred_element_type=f32)
            + jnp.dot(hate, wh_ref[...], preferred_element_type=f32))

    # classifier: Linear -> ReLU -> Dropout(0.2) -> Linear -> ReLU -> Linear
    # TODO(synk): nn.Dropout(0.2) is identity at inference; training mode would
    # need pltpu.prng_seed / prng_random_bits masking.
    h1 = jnp.maximum(
        jnp.dot(feat, w1_ref[...], preferred_element_type=f32) + b1_ref[...],
        0.0)
    h2 = jnp.maximum(
        jnp.dot(h1, w2_ref[...], preferred_element_type=f32) + b2_ref[...],
        0.0)
    out = jnp.dot(h2, w3_ref[...], preferred_element_type=f32) + b3_ref[...]

    o_ref[...] = out.astype(o_ref.dtype)   # logit lives in lane 0


def multimodal_classifier_forward(params, image, text, hate_words):
    """image: (B,C,H,W), text: (B,S,D), hate_words: (B,HATE) -> (B,1) logits."""
    B = image.shape[0]
    # Contiguous metadata-only reshapes; the pooling itself happens on the MXU
    # via the folded weights.
    img_flat = image.reshape(B, -1)    # (B, C*H*W)
    txt_flat = text.reshape(B, -1)     # (B, S*D)

    vmem = pl.BlockSpec(memory_space=pltpu.MemorySpace.VMEM)
    # TODO(synk): for large B, add grid=(pl.cdiv(B, tm),) with
    # dimension_semantics=("parallel",) (second TC on v7x) and grid-invariant
    # weight specs; at B=2 a single un-gridded call is optimal.
    out_wide = pl.pallas_call(
        _fused_forward_kernel,
        out_shape=jax.ShapeDtypeStruct((B, LANE), jnp.float32),
        in_specs=[vmem] * 12,
        out_specs=vmem,
    )(img_flat, txt_flat, hate_words,
      params["wi"], params["wt"], params["wh"],
      params["w1"], params["b1"], params["w2"], params["b2"],
      params["w3"], params["b3"])
    # lane-dense kernel output; the scalar logit is column 0
    return out_wide[:, :1]


# ------------------------- parameter initialization ------------------------

def _linear_init(key, fan_in, fan_out):
    # Mimics nn.Linear default init: U(-1/sqrt(fan_in), 1/sqrt(fan_in)).
    bound = 1.0 / float(fan_in) ** 0.5
    kw, kb = jax.random.split(key)
    w = jax.random.uniform(kw, (fan_in, fan_out), jnp.float32, -bound, bound)
    b = jax.random.uniform(kb, (fan_out,), jnp.float32, -bound, bound)
    return w, b


def init_params(key, img_c, img_h, img_w, img_feat,
                text_seq, text_in, text_hidden,
                hate_dim, hidden_size,
                use_image=1, use_text=1, use_hate_words=1):
    """Creates logically-sized params, then (ONCE, at init):
       * folds image GAP / text sequence-mean into the projection weights,
       * places each modality's projection into disjoint 128-lane column ranges,
       * zero-pads the classifier to 128x128,
       * folds the feature biases through W1 into b1."""
    ks = jax.random.split(key, 5)
    iw, ib = _linear_init(ks[0], img_c, img_feat)        # image projection
    tw, tb = _linear_init(ks[1], text_in, text_hidden)   # per-token text linear

    total = ((img_feat if use_image == 1 else 0)
             + (text_hidden if use_text == 1 else 0)
             + (hate_dim if use_hate_words == 1 else 0))
    assert 0 < total <= LANE and hidden_size <= LANE

    w1, b1 = _linear_init(ks[2], total, hidden_size)
    w2, b2 = _linear_init(ks[3], hidden_size, hidden_size)
    w3, b3 = _linear_init(ks[4], hidden_size, 1)

    hw = img_h * img_w
    off = 0
    wi_full = jnp.zeros((img_c * hw, LANE), jnp.float32)
    wt_full = jnp.zeros((text_seq * text_in, LANE), jnp.float32)
    wh_wide = jnp.zeros((hate_dim, LANE), jnp.float32)
    bf_wide = jnp.zeros((1, LANE), jnp.float32)
    if use_image == 1:
        # row (c*HW + p) = img_w[c, :] / (H*W)  -> GAP folded into the matmul
        wi_full = wi_full.at[:, off:off + img_feat].set(
            jnp.repeat(iw / float(hw), hw, axis=0))
        bf_wide = bf_wide.at[0, off:off + img_feat].set(ib)
        off += img_feat
    if use_text == 1:
        # row (s*D + d) = txt_w[d, :] / S  -> sequence mean folded (exact for
        # the linear stand-in backbone)
        wt_full = wt_full.at[:, off:off + text_hidden].set(
            jnp.tile(tw / float(text_seq), (text_seq, 1)))
        bf_wide = bf_wide.at[0, off:off + text_hidden].set(tb)
        off += text_hidden
    if use_hate_words == 1:
        # hate_words are passed through unchanged -> identity placement
        wh_wide = wh_wide.at[:, off:off + hate_dim].set(
            jnp.eye(hate_dim, dtype=jnp.float32))
        off += hate_dim
    assert off == total

    # --- zero-pad classifier to 128x128 (exact: pads contribute 0) ----------
    w1_pad = jnp.zeros((LANE, LANE), jnp.float32).at[:total, :hidden_size].set(w1)
    b1_pad = jnp.zeros((1, LANE), jnp.float32).at[0, :hidden_size].set(b1)
    # fold the constant feature bias (image/text projection biases) through W1
    b1_eff = bf_wide @ w1_pad + b1_pad
    w2_pad = jnp.zeros((LANE, LANE), jnp.float32).at[:hidden_size, :hidden_size].set(w2)
    b2_pad = jnp.zeros((1, LANE), jnp.float32).at[0, :hidden_size].set(b2)
    w3_pad = jnp.zeros((LANE, LANE), jnp.float32).at[:hidden_size, :1].set(w3)
    b3_pad = jnp.zeros((1, LANE), jnp.float32).at[0, :1].set(b3)

    params = {"wi": wi_full, "wt": wt_full, "wh": wh_wide,
              "w1": w1_pad, "b1": b1_eff, "w2": w2_pad, "b2": b2_pad,
              "w3": w3_pad, "b3": b3_pad}
    raw = {"img_w": iw, "img_b": ib, "txt_w": tw, "txt_b": tb,
           "w1": w1, "b1": b1, "w2": w2, "b2": b2, "w3": w3, "b3": b3}
    return params, raw


# ----------------------------------- main -----------------------------------

if __name__ == "__main__":
    B, C, HWDIM = 2, 4, 16          # image: (B, C, H, W)  NCHW
    S, TEXT_IN = 8, 16              # text:  (B, S, TEXT_IN)
    IMG_FEAT, TEXT_HIDDEN, HATE_DIM = 16, 16, 8   # TOTAL_FEATURES = 40
    HIDDEN = 32

    key = jax.random.PRNGKey(0)
    k_img, k_txt, k_hate, k_params = jax.random.split(key, 4)
    image = jax.random.normal(k_img, (B, C, HWDIM, HWDIM), jnp.float32)
    text = jax.random.normal(k_txt, (B, S, TEXT_IN), jnp.float32)
    hate_words = jax.random.normal(k_hate, (B, HATE_DIM), jnp.float32)

    params, _raw = init_params(k_params, C, HWDIM, HWDIM, IMG_FEAT,
                               S, TEXT_IN, TEXT_HIDDEN,
                               HATE_DIM, HIDDEN,
                               use_image=1, use_text=1, use_hate_words=1)

    out = multimodal_classifier_forward(params, image, text, hate_words)
    out = jax.block_until_ready(out)
    assert out.shape == (B, 1) and out.dtype == jnp.float32
    assert bool(jnp.all(jnp.isfinite(out)))
    print("KERNEL_OK")
</pallas_src>

<mosaic_0001>
module attributes {stable_mosaic.version = 11 : i64} {
  func.func @_fused_forward_kernel(%arg0: memref<2x1024xf32, #tpu.memory_space<vmem>>, %arg1: memref<2x128xf32, #tpu.memory_space<vmem>>, %arg2: memref<2x8xf32, #tpu.memory_space<vmem>>, %arg3: memref<1024x128xf32, #tpu.memory_space<vmem>>, %arg4: memref<128x128xf32, #tpu.memory_space<vmem>>, %arg5: memref<8x128xf32, #tpu.memory_space<vmem>>, %arg6: memref<128x128xf32, #tpu.memory_space<vmem>>, %arg7: memref<1x128xf32, #tpu.memory_space<vmem>>, %arg8: memref<128x128xf32, #tpu.memory_space<vmem>>, %arg9: memref<1x128xf32, #tpu.memory_space<vmem>>, %arg10: memref<128x128xf32, #tpu.memory_space<vmem>>, %arg11: memref<1x128xf32, #tpu.memory_space<vmem>>, %arg12: memref<2x128xf32, #tpu.memory_space<vmem>>) attributes {dimension_semantics = [], scalar_prefetch = 0 : i64, scratch_operands = 0 : i64, tpu.core_type = #tpu.core_type<tc>} {
    %c0 = arith.constant 0 : index
    %c0_0 = arith.constant 0 : index
    %0 = vector.load %arg0[%c0, %c0_0] : memref<2x1024xf32, #tpu.memory_space<vmem>>, vector<2x1024xf32>
    %c0_1 = arith.constant 0 : index
    %c0_2 = arith.constant 0 : index
    %1 = vector.load %arg1[%c0_1, %c0_2] : memref<2x128xf32, #tpu.memory_space<vmem>>, vector<2x128xf32>
    %c0_3 = arith.constant 0 : index
    %c0_4 = arith.constant 0 : index
    %2 = vector.load %arg2[%c0_3, %c0_4] : memref<2x8xf32, #tpu.memory_space<vmem>>, vector<2x8xf32>
    %c0_5 = arith.constant 0 : index
    %c0_6 = arith.constant 0 : index
    %3 = vector.load %arg3[%c0_5, %c0_6] : memref<1024x128xf32, #tpu.memory_space<vmem>>, vector<1024x128xf32>
    %cst = arith.constant dense<0.000000e+00> : vector<2x128xf32>
    %4 = tpu.matmul %0, %3, %cst {dimension_numbers = #tpu.dot_dimension_numbers<[1], [0], [0], [1], [0, 0, 1, 1], [], []>} : vector<2x1024xf32>, vector<1024x128xf32>, vector<2x128xf32> -> vector<2x128xf32>
    %c0_7 = arith.constant 0 : index
    %c0_8 = arith.constant 0 : index
    %5 = vector.load %arg4[%c0_7, %c0_8] : memref<128x128xf32, #tpu.memory_space<vmem>>, vector<128x128xf32>
    %cst_9 = arith.constant dense<0.000000e+00> : vector<2x128xf32>
    %6 = tpu.matmul %1, %5, %cst_9 {dimension_numbers = #tpu.dot_dimension_numbers<[1], [0], [0], [1], [0, 0, 1, 1], [], []>} : vector<2x128xf32>, vector<128x128xf32>, vector<2x128xf32> -> vector<2x128xf32>
    %7 = arith.addf %4, %6 : vector<2x128xf32>
    %c0_10 = arith.constant 0 : index
    %c0_11 = arith.constant 0 : index
    %8 = vector.load %arg5[%c0_10, %c0_11] : memref<8x128xf32, #tpu.memory_space<vmem>>, vector<8x128xf32>
    %cst_12 = arith.constant dense<0.000000e+00> : vector<2x128xf32>
    %9 = tpu.matmul %2, %8, %cst_12 {dimension_numbers = #tpu.dot_dimension_numbers<[1], [0], [0], [1], [0, 0, 1, 1], [], []>} : vector<2x8xf32>, vector<8x128xf32>, vector<2x128xf32> -> vector<2x128xf32>
    %10 = arith.addf %7, %9 : vector<2x128xf32>
    %c0_13 = arith.constant 0 : index
    %c0_14 = arith.constant 0 : index
    %11 = vector.load %arg6[%c0_13, %c0_14] : memref<128x128xf32, #tpu.memory_space<vmem>>, vector<128x128xf32>
    %cst_15 = arith.constant dense<0.000000e+00> : vector<2x128xf32>
    %12 = tpu.matmul %10, %11, %cst_15 {dimension_numbers = #tpu.dot_dimension_numbers<[1], [0], [0], [1], [0, 0, 1, 1], [], []>} : vector<2x128xf32>, vector<128x128xf32>, vector<2x128xf32> -> vector<2x128xf32>
    %c0_16 = arith.constant 0 : index
    %c0_17 = arith.constant 0 : index
    %13 = vector.load %arg7[%c0_16, %c0_17] : memref<1x128xf32, #tpu.memory_space<vmem>>, vector<1x128xf32>
    %14 = vector.broadcast %13 : vector<1x128xf32> to vector<2x128xf32>
    %15 = arith.addf %12, %14 : vector<2x128xf32>
    %cst_18 = arith.constant 0.000000e+00 : f32
    %16 = vector.broadcast %cst_18 : f32 to vector<2x128xf32>
    %17 = arith.maximumf %15, %16 : vector<2x128xf32>
    %c0_19 = arith.constant 0 : index
    %c0_20 = arith.constant 0 : index
    %18 = vector.load %arg8[%c0_19, %c0_20] : memref<128x128xf32, #tpu.memory_space<vmem>>, vector<128x128xf32>
    %cst_21 = arith.constant dense<0.000000e+00> : vector<2x128xf32>
    %19 = tpu.matmul %17, %18, %cst_21 {dimension_numbers = #tpu.dot_dimension_numbers<[1], [0], [0], [1], [0, 0, 1, 1], [], []>} : vector<2x128xf32>, vector<128x128xf32>, vector<2x128xf32> -> vector<2x128xf32>
    %c0_22 = arith.constant 0 : index
    %c0_23 = arith.constant 0 : index
    %20 = vector.load %arg9[%c0_22, %c0_23] : memref<1x128xf32, #tpu.memory_space<vmem>>, vector<1x128xf32>
    %21 = vector.broadcast %20 : vector<1x128xf32> to vector<2x128xf32>
    %22 = arith.addf %19, %21 : vector<2x128xf32>
    %cst_24 = arith.constant 0.000000e+00 : f32
    %23 = vector.broadcast %cst_24 : f32 to vector<2x128xf32>
    %24 = arith.maximumf %22, %23 : vector<2x128xf32>
    %c0_25 = arith.constant 0 : index
    %c0_26 = arith.constant 0 : index
    %25 = vector.load %arg10[%c0_25, %c0_26] : memref<128x128xf32, #tpu.memory_space<vmem>>, vector<128x128xf32>
    %cst_27 = arith.constant dense<0.000000e+00> : vector<2x128xf32>
    %26 = tpu.matmul %24, %25, %cst_27 {dimension_numbers = #tpu.dot_dimension_numbers<[1], [0], [0], [1], [0, 0, 1, 1], [], []>} : vector<2x128xf32>, vector<128x128xf32>, vector<2x128xf32> -> vector<2x128xf32>
    %c0_28 = arith.constant 0 : index
    %c0_29 = arith.constant 0 : index
    %27 = vector.load %arg11[%c0_28, %c0_29] : memref<1x128xf32, #tpu.memory_space<vmem>>, vector<1x128xf32>
    %28 = vector.broadcast %27 : vector<1x128xf32> to vector<2x128xf32>
    %29 = arith.addf %26, %28 : vector<2x128xf32>
    %c0_30 = arith.constant 0 : index
    %c0_31 = arith.constant 0 : index
    %30 = vector.load %arg12[%c0_30, %c0_31] : memref<2x128xf32, #tpu.memory_space<vmem>>, vector<2x128xf32>
    tpu.vector_store %arg12[%c0_30, %c0_31], %29 {strides = array<i32>} : memref<2x128xf32, #tpu.memory_space<vmem>>, vector<2x128xf32>,
    return
  }
}

</mosaic_0001>

<llo_original>
// kernel: tpu_custom_call.1
$region0: #{tpu_custom_call.1}
  #allocation0 [shape = 'u32[]', space=smem, size = 0x4, offset = 0x4, fixed_abs, tag = 'smem constant byte address 0x4 - core index']
  #allocation1 [shape = 'u32[144,128]{1,0:T(1,128)}', space=vmem, size = 0x12000, scoped, tag = 'internal scratch']
  %s0 = inlined_call_operand.hbm [shape: f32[2,1024], index: 0, kind: input, shape index: {}]
  %s1 = inlined_call_operand.vmem [shape: f32[2,128], index: 1, kind: input, shape index: {}]
  %s2 = inlined_call_operand.vmem [shape: f32[2,8], index: 2, kind: input, shape index: {}]
  %s3 = inlined_call_operand.hbm [shape: f32[1024,128], index: 3, kind: input, shape index: {}]
  %s4 = inlined_call_operand.hbm [shape: f32[128,128], index: 4, kind: input, shape index: {}]
  %s5 = inlined_call_operand.vmem [shape: f32[8,128], index: 5, kind: input, shape index: {}]
  %s6 = inlined_call_operand.hbm [shape: f32[128,128], index: 6, kind: input, shape index: {}]
  %s7 = inlined_call_operand.vmem [shape: f32[1,128], index: 7, kind: input, shape index: {}]
  %s8 = inlined_call_operand.hbm [shape: f32[128,128], index: 8, kind: input, shape index: {}]
  %s9 = inlined_call_operand.vmem [shape: f32[1,128], index: 9, kind: input, shape index: {}]
  %s10 = inlined_call_operand.hbm [shape: f32[128,128], index: 10, kind: input, shape index: {}]
  %s11 = inlined_call_operand.vmem [shape: f32[1,128], index: 11, kind: input, shape index: {}]
  %s12 = inlined_call_operand.hbm [shape: f32[2,128], index: 12, kind: output, shape index: {}]
  %s13 = sld [smem:[#allocation0]]
  $region82: #{tpu_custom_call.1} parent=0
    _
  %s15 = ssub.s32 1, %s13
  %s16 = scalar_select 0, %s15, %s13
  $region1: #{tpu_custom_call.1} parent=0
    #allocation2 [shape = 'u8[8192]{0}', space=vmem, size = 0x2000, scoped, tag = 'input window, operand 0, single buffered']
    #allocation3 [shape = 's32[1]{0}', space=sflag, size = 0x4, scoped, tag = 'scoped memory for tpu_custom_call.1']
    #allocation4 [shape = 's32[1]{0}', space=sflag, size = 0x4, scoped, tag = 'scoped memory for tpu_custom_call.1']
    #allocation5 [shape = 'u8[524288]{0}', space=vmem, size = 0x80000, scoped, tag = 'input window, operand 3, single buffered']
    #allocation6 [shape = 's32[1]{0}', space=sflag, size = 0x4, scoped, tag = 'scoped memory for tpu_custom_call.1']
    #allocation7 [shape = 'u8[65536]{0}', space=vmem, size = 0x10000, scoped, tag = 'input window, operand 4, single buffered']
    #allocation8 [shape = 'u8[65536]{0}', space=vmem, size = 0x10000, scoped, tag = 'input window, operand 6, single buffered']
    #allocation9 [shape = 's32[1]{0}', space=sflag, size = 0x4, scoped, tag = 'scoped memory for tpu_custom_call.1']
    #allocation10 [shape = 'u8[65536]{0}', space=vmem, size = 0x10000, scoped, tag = 'input window, operand 8, single buffered']
    #allocation11 [shape = 'u8[65536]{0}', space=vmem, size = 0x10000, scoped, tag = 'input window, operand 10, single buffered']
    #allocation12 [shape = 's32[1]{0}', space=sflag, size = 0x4, scoped, tag = 'scoped memory for tpu_custom_call.1']
    #allocation13 [shape = 'u8[1024]{0}', space=vmem, size = 0x400, scoped, tag = 'output window, operand 0, single buffered']
    %17 = vsyncpa [#allocation3], 0
    %18 = vsyncpa [#allocation6], 0
    %19 = vsyncpa [#allocation9], 0
    %20 = vsyncpa [#allocation12], 0
    %21 = vsyncpa [#allocation4], 0
    // Predicated region
    $region2: #{tpu_custom_call.1} parent=1 // pred_check
      _
    $region3: #{tpu_custom_call.1} parent=1 // pred_check_branch
      %23 = sbr.rel (0) target = $region5
    $region4: #{tpu_custom_call.1} parent=1 // pred_region
      %s25 = ssub.s32 256, 256
      %26 = vsyncadd [#allocation3], %s25
      %s28 = sshll.u32 [#allocation2], 4
      %s29 = int_to_ptr.vmem [resolvable:$true] %s28
      %31 = dma.hbm_to_vmem [thread:$0]  %s0, 256, %s29, [#allocation3]
    $region5: #{tpu_custom_call.1} parent=1 // pred_fallthru
      _
    // Predicated region
    $region6: #{tpu_custom_call.1} parent=1 // pred_check
      _
    $region7: #{tpu_custom_call.1} parent=1 // pred_check_branch
      %33 = sbr.rel (0) target = $region9
    $region8: #{tpu_custom_call.1} parent=1 // pred_region
      _
    $region9: #{tpu_custom_call.1} parent=1 // pred_fallthru
      _
    // Predicated region
    $region10: #{tpu_custom_call.1} parent=1 // pred_check
      _
    $region11: #{tpu_custom_call.1} parent=1 // pred_check_branch
      %35 = sbr.rel (0) target = $region13
    $region12: #{tpu_custom_call.1} parent=1 // pred_region
      _
    $region13: #{tpu_custom_call.1} parent=1 // pred_fallthru
      _
    // Predicated region
    $region14: #{tpu_custom_call.1} parent=1 // pred_check
      _
    $region15: #{tpu_custom_call.1} parent=1 // pred_check_branch
      %37 = sbr.rel (0) target = $region17
    $region16: #{tpu_custom_call.1} parent=1 // pred_region
      %s39 = ssub.s32 16384, 16384
      %40 = vsyncadd [#allocation6], %s39
      %s41 = sshll.u32 [#allocation5], 4
      %s42 = int_to_ptr.vmem [resolvable:$true] %s41
      %47 = dma.hbm_to_vmem [thread:$0]  %s3, 16384, %s42, [#allocation6], 128, 128, 8
    $region17: #{tpu_custom_call.1} parent=1 // pred_fallthru
      _
    // Predicated region
    $region18: #{tpu_custom_call.1} parent=1 // pred_check
      _
    $region19: #{tpu_custom_call.1} parent=1 // pred_check_branch
      %49 = sbr.rel (0) target = $region21
    $region20: #{tpu_custom_call.1} parent=1 // pred_region
      %s51 = ssub.s32 2048, 2048
      %52 = vsyncadd [#allocation6], %s51
      %s53 = sshll.u32 [#allocation7], 4
      %s54 = int_to_ptr.vmem [resolvable:$true] %s53
      %59 = dma.hbm_to_vmem [thread:$0]  %s4, 2048, %s54, [#allocation6], 128, 128, 8
    $region21: #{tpu_custom_call.1} parent=1 // pred_fallthru
      _
    // Predicated region
    $region22: #{tpu_custom_call.1} parent=1 // pred_check
      _
    $region23: #{tpu_custom_call.1} parent=1 // pred_check_branch
      %61 = sbr.rel (0) target = $region25
    $region24: #{tpu_custom_call.1} parent=1 // pred_region
      _
    $region25: #{tpu_custom_call.1} parent=1 // pred_fallthru
      _
    // Predicated region
    $region26: #{tpu_custom_call.1} parent=1 // pred_check
      _
    $region27: #{tpu_custom_call.1} parent=1 // pred_check_branch
      %63 = sbr.rel (0) target = $region29
    $region28: #{tpu_custom_call.1} parent=1 // pred_region
      %s65 = ssub.s32 2048, 2048
      %66 = vsyncadd [#allocation9], %s65
      %s67 = sshll.u32 [#allocation8], 4
      %s68 = int_to_ptr.vmem [resolvable:$true] %s67
      %73 = dma.hbm_to_vmem [thread:$0]  %s6, 2048, %s68, [#allocation9], 128, 128, 8
    $region29: #{tpu_custom_call.1} parent=1 // pred_fallthru
      _
    // Predicated region
    $region30: #{tpu_custom_call.1} parent=1 // pred_check
      _
    $region31: #{tpu_custom_call.1} parent=1 // pred_check_branch
      %75 = sbr.rel (0) target = $region33
    $region32: #{tpu_custom_call.1} parent=1 // pred_region
      _
    $region33: #{tpu_custom_call.1} parent=1 // pred_fallthru
      _
    // Predicated region
    $region34: #{tpu_custom_call.1} parent=1 // pred_check
      _
    $region35: #{tpu_custom_call.1} parent=1 // pred_check_branch
      %77 = sbr.rel (0) target = $region37
    $region36: #{tpu_custom_call.1} parent=1 // pred_region
      %s79 = ssub.s32 2048, 2048
      %80 = vsyncadd [#allocation9], %s79
      %s81 = sshll.u32 [#allocation10], 4
      %s82 = int_to_ptr.vmem [resolvable:$true] %s81
      %87 = dma.hbm_to_vmem [thread:$0]  %s8, 2048, %s82, [#allocation9], 128, 128, 8
    $region37: #{tpu_custom_call.1} parent=1 // pred_fallthru
      _
    // Predicated region
    $region38: #{tpu_custom_call.1} parent=1 // pred_check
      _
    $region39: #{tpu_custom_call.1} parent=1 // pred_check_branch
      %89 = sbr.rel (0) target = $region41
    $region40: #{tpu_custom_call.1} parent=1 // pred_region
      _
    $region41: #{tpu_custom_call.1} parent=1 // pred_fallthru
      _
    // Predicated region
    $region42: #{tpu_custom_call.1} parent=1 // pred_check
      _
    $region43: #{tpu_custom_call.1} parent=1 // pred_check_branch
      %91 = sbr.rel (0) target = $region45
    $region44: #{tpu_custom_call.1} parent=1 // pred_region
      %s93 = ssub.s32 2048, 2048
      %94 = vsyncadd [#allocation12], %s93
      %s95 = sshll.u32 [#allocation11], 4
      %s96 = int_to_ptr.vmem [resolvable:$true] %s95
      %101 = dma.hbm_to_vmem [thread:$0]  %s10, 2048, %s96, [#allocation12], 128, 128, 8
    $region45: #{tpu_custom_call.1} parent=1 // pred_fallthru
      _
    // Predicated region
    $region46: #{tpu_custom_call.1} parent=1 // pred_check
      _
    $region47: #{tpu_custom_call.1} parent=1 // pred_check_branch
      %103 = sbr.rel (0) target = $region49
    $region48: #{tpu_custom_call.1} parent=1 // pred_region
      _
    $region49: #{tpu_custom_call.1} parent=1 // pred_fallthru
      _
    // Predicated region
    $region50: #{tpu_custom_call.1} parent=1 // pred_check
      _
    $region51: #{tpu_custom_call.1} parent=1 // pred_check_branch
      %105 = sbr.rel (0) target = $region53
    $region52: #{tpu_custom_call.1} parent=1 // pred_region
      %106 = dma.done [#allocation3], 256
    $region53: #{tpu_custom_call.1} parent=1 // pred_fallthru
      _
    // Predicated region
    $region54: #{tpu_custom_call.1} parent=1 // pred_check
      _
    $region55: #{tpu_custom_call.1} parent=1 // pred_check_branch
      %108 = sbr.rel (0) target = $region57
    $region56: #{tpu_custom_call.1} parent=1 // pred_region
      %109 = dma.done [#allocation6], 16384
    $region57: #{tpu_custom_call.1} parent=1 // pred_fallthru
      _
    // Predicated region
    $region58: #{tpu_custom_call.1} parent=1 // pred_check
      _
    $region59: #{tpu_custom_call.1} parent=1 // pred_check_branch
      %111 = sbr.rel (0) target = $region61
    $region60: #{tpu_custom_call.1} parent=1 // pred_region
      %112 = dma.done [#allocation6], 2048
    $region61: #{tpu_custom_call.1} parent=1 // pred_fallthru
      _
    // Predicated region
    $region62: #{tpu_custom_call.1} parent=1 // pred_check
      _
    $region63: #{tpu_custom_call.1} parent=1 // pred_check_branch
      %114 = sbr.rel (0) target = $region65
    $region64: #{tpu_custom_call.1} parent=1 // pred_region
      %115 = dma.done [#allocation9], 2048
    $region65: #{tpu_custom_call.1} parent=1 // pred_fallthru
      _
    // Predicated region
    $region66: #{tpu_custom_call.1} parent=1 // pred_check
      _
    $region67: #{tpu_custom_call.1} parent=1 // pred_check_branch
      %117 = sbr.rel (0) target = $region69
    $region68: #{tpu_custom_call.1} parent=1 // pred_region
      %118 = dma.done [#allocation9], 2048
    $region69: #{tpu_custom_call.1} parent=1 // pred_fallthru
      _
    // Predicated region
    $region70: #{tpu_custom_call.1} parent=1 // pred_check
      _
    $region71: #{tpu_custom_call.1} parent=1 // pred_check_branch
      %120 = sbr.rel (0) target = $region73
    $region72: #{tpu_custom_call.1} parent=1 // pred_region
      %121 = dma.done [#allocation12], 2048
    $region73: #{tpu_custom_call.1} parent=1 // pred_fallthru
      _
    %v122 = vld [vmem:[#allocation2] sm:$0xff]
    %v123 = vld [vmem:[#allocation2 + $0x8] sm:$0xff]
    %v124 = vld [vmem:[%s1] sm:$0x3]
    %v125 = vld [vmem:[%s2] sm:$0x3]
    %v126 = vld [vmem:[#allocation5] sm:$0xff]
    %v127 = vld [vmem:[#allocation5 + $0x8] sm:$0xff]
    %v128 = vld [vmem:[#allocation5 + $0x10] sm:$0xff]
    %v129 = vld [vmem:[#allocation5 + $0x18] sm:$0xff]
    %v130 = vld [vmem:[#allocation5 + $0x20] sm:$0xff]
    %v131 = vld [vmem:[#allocation5 + $0x28] sm:$0xff]
    %v132 = vld [vmem:[#allocation5 + $0x30] sm:$0xff]
    %v133 = vld [vmem:[#allocation5 + $0x38] sm:$0xff]
    %v134 = vld [vmem:[#allocation5 + $0x40] sm:$0xff]
    %v135 = vld [vmem:[#allocation5 + $0x48] sm:$0xff]
    %v136 = vld [vmem:[#allocation5 + $0x50] sm:$0xff]
    %v137 = vld [vmem:[#allocation5 + $0x58] sm:$0xff]
    %v138 = vld [vmem:[#allocation5 + $0x60] sm:$0xff]
    %v139 = vld [vmem:[#allocation5 + $0x68] sm:$0xff]
    %v140 = vld [vmem:[#allocation5 + $0x70] sm:$0xff]
    %v141 = vld [vmem:[#allocation5 + $0x78] sm:$0xff]
    %v142 = vld [vmem:[#allocation5 + $0x80] sm:$0xff]
    %v143 = vld [vmem:[#allocation5 + $0x88] sm:$0xff]
    %v144 = vld [vmem:[#allocation5 + $0x90] sm:$0xff]
    %v145 = vld [vmem:[#allocation5 + $0x98] sm:$0xff]
    %v146 = vld [vmem:[#allocation5 + $0xa0] sm:$0xff]
    %v147 = vld [vmem:[#allocation5 + $0xa8] sm:$0xff]
    %v148 = vld [vmem:[#allocation5 + $0xb0] sm:$0xff]
    %v149 = vld [vmem:[#allocation5 + $0xb8] sm:$0xff]
    %v150 = vld [vmem:[#allocation5 + $0xc0] sm:$0xff]
    %v151 = vld [vmem:[#allocation5 + $0xc8] sm:$0xff]
    %v152 = vld [vmem:[#allocation5 + $0xd0] sm:$0xff]
    %v153 = vld [vmem:[#allocation5 + $0xd8] sm:$0xff]
    %v154 = vld [vmem:[#allocation5 + $0xe0] sm:$0xff]
    %v155 = vld [vmem:[#allocation5 + $0xe8] sm:$0xff]
    %v156 = vld [vmem:[#allocation5 + $0xf0] sm:$0xff]
    %v157 = vld [vmem:[#allocation5 + $0xf8] sm:$0xff]
    %v158 = vld [vmem:[#allocation5 + $0x100] sm:$0xff]
    %v159 = vld [vmem:[#allocation5 + $0x108] sm:$0xff]
    %v160 = vld [vmem:[#allocation5 + $0x110] sm:$0xff]
    %v161 = vld [vmem:[#allocation5 + $0x118] sm:$0xff]
    %v162 = vld [vmem:[#allocation5 + $0x120] sm:$0xff]
    %v163 = vld [vmem:[#allocation5 + $0x128] sm:$0xff]
    %v164 = vld [vmem:[#allocation5 + $0x130] sm:$0xff]
    %v165 = vld [vmem:[#allocation5 + $0x138] sm:$0xff]
    %v166 = vld [vmem:[#allocation5 + $0x140] sm:$0xff]
    %v167 = vld [vmem:[#allocation5 + $0x148] sm:$0xff]
    %v168 = vld [vmem:[#allocation5 + $0x150] sm:$0xff]
    %v169 = vld [vmem:[#allocation5 + $0x158] sm:$0xff]
    %v170 = vld [vmem:[#allocation5 + $0x160] sm:$0xff]
    %v171 = vld [vmem:[#allocation5 + $0x168] sm:$0xff]
    %v172 = vld [vmem:[#allocation5 + $0x170] sm:$0xff]
    %v173 = vld [vmem:[#allocation5 + $0x178] sm:$0xff]
    %v174 = vld [vmem:[#allocation5 + $0x180] sm:$0xff]
    %v175 = vld [vmem:[#allocation5 + $0x188] sm:$0xff]
    %v176 = vld [vmem:[#allocation5 + $0x190] sm:$0xff]
    %v177 = vld [vmem:[#allocation5 + $0x198] sm:$0xff]
    %v178 = vld [vmem:[#allocation5 + $0x1a0] sm:$0xff]
    %v179 = vld [vmem:[#allocation5 + $0x1a8] sm:$0xff]
    %v180 = vld [vmem:[#allocation5 + $0x1b0] sm:$0xff]
    %v181 = vld [vmem:[#allocation5 + $0x1b8] sm:$0xff]
    %v182 = vld [vmem:[#allocation5 + $0x1c0] sm:$0xff]
    %v183 = vld [vmem:[#allocation5 + $0x1c8] sm:$0xff]
    %v184 = vld [vmem:[#allocation5 + $0x1d0] sm:$0xff]
    %v185 = vld [vmem:[#allocation5 + $0x1d8] sm:$0xff]
    %v186 = vld [vmem:[#allocation5 + $0x1e0] sm:$0xff]
    %v187 = vld [vmem:[#allocation5 + $0x1e8] sm:$0xff]
    %v188 = vld [vmem:[#allocation5 + $0x1f0] sm:$0xff]
    %v189 = vld [vmem:[#allocation5 + $0x1f8] sm:$0xff]
    %v190 = vld [vmem:[#allocation5 + $0x200] sm:$0xff]
    %v191 = vld [vmem:[#allocation5 + $0x208] sm:$0xff]
    %v192 = vld [vmem:[#allocation5 + $0x210] sm:$0xff]
    %v193 = vld [vmem:[#allocation5 + $0x218] sm:$0xff]
    %v194 = vld [vmem:[#allocation5 + $0x220] sm:$0xff]
    %v195 = vld [vmem:[#allocation5 + $0x228] sm:$0xff]
    %v196 = vld [vmem:[#allocation5 + $0x230] sm:$0xff]
    %v197 = vld [vmem:[#allocation5 + $0x238] sm:$0xff]
    %v198 = vld [vmem:[#allocation5 + $0x240] sm:$0xff]
    %v199 = vld [vmem:[#allocation5 + $0x248] sm:$0xff]
    %v200 = vld [vmem:[#allocation5 + $0x250] sm:$0xff]
    %v201 = vld [vmem:[#allocation5 + $0x258] sm:$0xff]
    %v202 = vld [vmem:[#allocation5 + $0x260] sm:$0xff]
    %v203 = vld [vmem:[#allocation5 + $0x268] sm:$0xff]
    %v204 = vld [vmem:[#allocation5 + $0x270] sm:$0xff]
    %v205 = vld [vmem:[#allocation5 + $0x278] sm:$0xff]
    %v206 = vld [vmem:[#allocation5 + $0x280] sm:$0xff]
    %v207 = vld [vmem:[#allocation5 + $0x288] sm:$0xff]
    %v208 = vld [vmem:[#allocation5 + $0x290] sm:$0xff]
    %v209 = vld [vmem:[#allocation5 + $0x298] sm:$0xff]
    %v210 = vld [vmem:[#allocation5 + $0x2a0] sm:$0xff]
    %v211 = vld [vmem:[#allocation5 + $0x2a8] sm:$0xff]
    %v212 = vld [vmem:[#allocation5 + $0x2b0] sm:$0xff]
    %v213 = vld [vmem:[#allocation5 + $0x2b8] sm:$0xff]
    %v214 = vld [vmem:[#allocation5 + $0x2c0] sm:$0xff]
    %v215 = vld [vmem:[#allocation5 + $0x2c8] sm:$0xff]
    %v216 = vld [vmem:[#allocation5 + $0x2d0] sm:$0xff]
    %v217 = vld [vmem:[#allocation5 + $0x2d8] sm:$0xff]
    %v218 = vld [vmem:[#allocation5 + $0x2e0] sm:$0xff]
    %v219 = vld [vmem:[#allocation5 + $0x2e8] sm:$0xff]
    %v220 = vld [vmem:[#allocation5 + $0x2f0] sm:$0xff]
    %v221 = vld [vmem:[#allocation5 + $0x2f8] sm:$0xff]
    %v222 = vld [vmem:[#allocation5 + $0x300] sm:$0xff]
    %v223 = vld [vmem:[#allocation5 + $0x308] sm:$0xff]
    %v224 = vld [vmem:[#allocation5 + $0x310] sm:$0xff]
    %v225 = vld [vmem:[#allocation5 + $0x318] sm:$0xff]
    %v226 = vld [vmem:[#allocation5 + $0x320] sm:$0xff]
    %v227 = vld [vmem:[#allocation5 + $0x328] sm:$0xff]
    %v228 = vld [vmem:[#allocation5 + $0x330] sm:$0xff]
    %v229 = vld [vmem:[#allocation5 + $0x338] sm:$0xff]
    %v230 = vld [vmem:[#allocation5 + $0x340] sm:$0xff]
    %v231 = vld [vmem:[#allocation5 + $0x348] sm:$0xff]
    %v232 = vld [vmem:[#allocation5 + $0x350] sm:$0xff]
    %v233 = vld [vmem:[#allocation5 + $0x358] sm:$0xff]
    %v234 = vld [vmem:[#allocation5 + $0x360] sm:$0xff]
    %v235 = vld [vmem:[#allocation5 + $0x368] sm:$0xff]
    %v236 = vld [vmem:[#allocation5 + $0x370] sm:$0xff]
    %v237 = vld [vmem:[#allocation5 + $0x378] sm:$0xff]
    %v238 = vld [vmem:[#allocation5 + $0x380] sm:$0xff]
    %v239 = vld [vmem:[#allocation5 + $0x388] sm:$0xff]
    %v240 = vld [vmem:[#allocation5 + $0x390] sm:$0xff]
    %v241 = vld [vmem:[#allocation5 + $0x398] sm:$0xff]
    %v242 = vld [vmem:[#allocation5 + $0x3a0] sm:$0xff]
    %v243 = vld [vmem:[#allocation5 + $0x3a8] sm:$0xff]
    %v244 = vld [vmem:[#allocation5 + $0x3b0] sm:$0xff]
    %v245 = vld [vmem:[#allocation5 + $0x3b8] sm:$0xff]
    %v246 = vld [vmem:[#allocation5 + $0x3c0] sm:$0xff]
    %v247 = vld [vmem:[#allocation5 + $0x3c8] sm:$0xff]
    %v248 = vld [vmem:[#allocation5 + $0x3d0] sm:$0xff]
    %v249 = vld [vmem:[#allocation5 + $0x3d8] sm:$0xff]
    %v250 = vld [vmem:[#allocation5 + $0x3e0] sm:$0xff]
    %v251 = vld [vmem:[#allocation5 + $0x3e8] sm:$0xff]
    %v252 = vld [vmem:[#allocation5 + $0x3f0] sm:$0xff]
    %v253 = vld [vmem:[#allocation5 + $0x3f8] sm:$0xff]
    %v254 = vld [vmem:[#allocation7] sm:$0xff]
    %v255 = vld [vmem:[#allocation7 + $0x8] sm:$0xff]
    %v256 = vld [vmem:[#allocation7 + $0x10] sm:$0xff]
    %v257 = vld [vmem:[#allocation7 + $0x18] sm:$0xff]
    %v258 = vld [vmem:[#allocation7 + $0x20] sm:$0xff]
    %v259 = vld [vmem:[#allocation7 + $0x28] sm:$0xff]
    %v260 = vld [vmem:[#allocation7 + $0x30] sm:$0xff]
    %v261 = vld [vmem:[#allocation7 + $0x38] sm:$0xff]
    %v262 = vld [vmem:[#allocation7 + $0x40] sm:$0xff]
    %v263 = vld [vmem:[#allocation7 + $0x48] sm:$0xff]
    %v264 = vld [vmem:[#allocation7 + $0x50] sm:$0xff]
    %v265 = vld [vmem:[#allocation7 + $0x58] sm:$0xff]
    %v266 = vld [vmem:[#allocation7 + $0x60] sm:$0xff]
    %v267 = vld [vmem:[#allocation7 + $0x68] sm:$0xff]
    %v268 = vld [vmem:[#allocation7 + $0x70] sm:$0xff]
    %v269 = vld [vmem:[#allocation7 + $0x78] sm:$0xff]
    %270 = vmatprep.subr.mxu0 0.0
    %271 = vmatpush1.msra.mxu0 %v254
    %272 = vmatprep.subr.mxu0 0.0
    %273 = vmatpush1.msra.mxu0 %v255
    %274 = vmatprep.subr.mxu0 0.0
    %275 = vmatpush1.msra.mxu0 %v256
    %276 = vmatprep.subr.mxu0 0.0
    %277 = vmatpush1.msra.mxu0 %v257
    %278 = vmatprep.subr.mxu0 0.0
    %279 = vmatpush1.msra.mxu0 %v258
    %280 = vmatprep.subr.mxu0 0.0
    %281 = vmatpush1.msra.mxu0 %v259
    %282 = vmatprep.subr.mxu0 0.0
    %283 = vmatpush1.msra.mxu0 %v260
    %284 = vmatprep.subr.mxu0 0.0
    %285 = vmatpush1.msra.mxu0 %v261
    %286 = vmatprep.subr.mxu0 0.0
    %287 = vmatpush1.msra.mxu0 %v262
    %288 = vmatprep.subr.mxu0 0.0
    %289 = vmatpush1.msra.mxu0 %v263
    %290 = vmatprep.subr.mxu0 0.0
    %291 = vmatpush1.msra.mxu0 %v264
    %292 = vmatprep.subr.mxu0 0.0
    %293 = vmatpush1.msra.mxu0 %v265
    %294 = vmatprep.subr.mxu0 0.0
    %295 = vmatpush1.msra.mxu0 %v266
    %296 = vmatprep.subr.mxu0 0.0
    %297 = vmatpush1.msra.mxu0 %v267
    %298 = vmatprep.subr.mxu0 0.0
    %299 = vmatpush1.msra.mxu0 %v268
    %300 = vmatprep.subr.mxu0 0.0
    %301 = vmatpush1.msra.mxu0 %v269
    %302 = vmatprep.subr.mxu0 0.0
    %303 = vmatpush1.msra.mxu0 0.0
    %304 = vmatprep.subr.mxu0 0.0
    %305 = vmatpush1.msra.mxu0 0.0
    %306 = vmatprep.subr.mxu0 0.0
    %307 = vmatpush1.msra.mxu0 0.0
    %308 = vmatprep.subr.mxu0 0.0
    %309 = vmatpush1.msra.mxu0 0.0
    %310 = vmatprep.subr.mxu0 0.0
    %311 = vmatpush1.msra.mxu0 0.0
    %312 = vmatprep.subr.mxu0 0.0
    %313 = vmatpush1.msra.mxu0 0.0
    %314 = vmatprep.subr.mxu0 0.0
    %315 = vmatpush1.msra.mxu0 0.0
    %316 = vmatprep.subr.mxu0 0.0
    %317 = vmatpush1.msra.mxu0 0.0
    %318 = vmatprep.subr.mxu0 0.0
    %319 = vmatpush1.msra.mxu0 0.0
    %320 = vmatprep.subr.mxu0 0.0
    %321 = vmatpush1.msra.mxu0 0.0
    %322 = vmatprep.subr.mxu0 0.0
    %323 = vmatpush1.msra.mxu0 0.0
    %324 = vmatprep.subr.mxu0 0.0
    %325 = vmatpush1.msra.mxu0 0.0
    %326 = vmatprep.subr.mxu0 0.0
    %327 = vmatpush1.msra.mxu0 0.0
    %328 = vmatprep.subr.mxu0 0.0
    %329 = vmatpush1.msra.mxu0 0.0
    %330 = vmatprep.subr.mxu0 0.0
    %331 = vmatpush1.msra.mxu0 0.0
    %332 = vmatprep.subr.mxu0 0.0
    %333 = vmatpush1.msra.mxu0 0.0
    %334 = vmatprep.mubr.f32.mxu0 0.0
    %335 = vmatmul.mubr.f32.gmra.mrb[0].mxu0 %v124
    %v336 = vpop.f32.mrb[0].mxu0
    %v337 = vadd.f32 0.0, %v336
    %v338 = vpop.f32.mrb[0].mxu0
    %339 = vdwg.mxu0
    %v342 = vcombine.high %v122, %v122
    %v344 = vunpack.c.l.s4 1983009808
    %v345 = vunpack.c.0.s8 %v344
    %v346 = vlaneseq
    %v347 = vshrl.u32 %v346, 7
    %v348 = vsub.s32 %v345, %v347
    %v349 = vrot.slane %v122, %v348
    %v351 = vunpack.c.l.s4 1983009808
    %v352 = vunpack.c.0.s8 %v351
    %v353 = vlaneseq
    %v354 = vshrl.u32 %v353, 7
    %v355 = vsub.s32 %v352, %v354
    %v356 = vrot.slane %v342, %v355
    %v357 = vcombine.high %v349, %v349
    %v358 = vcombine.high %v356, %v356
    %v359 = vcombine.high %v123, %v123
    %v361 = vunpack.c.l.s4 1983009808
    %v362 = vunpack.c.0.s8 %v361
    %v363 = vlaneseq
    %v364 = vshrl.u32 %v363, 7
    %v365 = vsub.s32 %v362, %v364
    %v366 = vrot.slane %v123, %v365
    %v368 = vunpack.c.l.s4 1983009808
    %v369 = vunpack.c.0.s8 %v368
    %v370 = vlaneseq
    %v371 = vshrl.u32 %v370, 7
    %v372 = vsub.s32 %v369, %v371
    %v373 = vrot.slane %v359, %v372
    %v374 = vcombine.high %v366, %v366
    %v375 = vcombine.high %v373, %v373
    %384 = vmatprep.subr.mxu0 0.0
    %385 = vmatpush1.msra.mxu0 %v126
    %386 = vmatprep.subr.mxu0 0.0
    %387 = vmatpush1.msra.mxu0 %v127
    %388 = vmatprep.subr.mxu0 0.0
    %389 = vmatpush1.msra.mxu0 %v128
    %390 = vmatprep.subr.mxu0 0.0
    %391 = vmatpush1.msra.mxu0 %v129
    %392 = vmatprep.subr.mxu0 0.0
    %393 = vmatpush1.msra.mxu0 %v130
    %394 = vmatprep.subr.mxu0 0.0
    %395 = vmatpush1.msra.mxu0 %v131
    %396 = vmatprep.subr.mxu0 0.0
    %397 = vmatpush1.msra.mxu0 %v132
    %398 = vmatprep.subr.mxu0 0.0
    %399 = vmatpush1.msra.mxu0 %v133
    %400 = vmatprep.subr.mxu0 0.0
    %401 = vmatpush1.msra.mxu0 %v134
    %402 = vmatprep.subr.mxu0 0.0
    %403 = vmatpush1.msra.mxu0 %v135
    %404 = vmatprep.subr.mxu0 0.0
    %405 = vmatpush1.msra.mxu0 %v136
    %406 = vmatprep.subr.mxu0 0.0
    %407 = vmatpush1.msra.mxu0 %v137
    %408 = vmatprep.subr.mxu0 0.0
    %409 = vmatpush1.msra.mxu0 %v138
    %410 = vmatprep.subr.mxu0 0.0
    %411 = vmatpush1.msra.mxu0 %v139
    %412 = vmatprep.subr.mxu0 0.0
    %413 = vmatpush1.msra.mxu0 %v140
    %414 = vmatprep.subr.mxu0 0.0
    %415 = vmatpush1.msra.mxu0 %v141
    %416 = vmatprep.subr.mxu0 0.0
    %417 = vmatpush1.msra.mxu0 %v142
    %418 = vmatprep.subr.mxu0 0.0
    %419 = vmatpush1.msra.mxu0 %v143
    %420 = vmatprep.subr.mxu0 0.0
    %421 = vmatpush1.msra.mxu0 %v144
    %422 = vmatprep.subr.mxu0 0.0
    %423 = vmatpush1.msra.mxu0 %v145
    %424 = vmatprep.subr.mxu0 0.0
    %425 = vmatpush1.msra.mxu0 %v146
    %426 = vmatprep.subr.mxu0 0.0
    %427 = vmatpush1.msra.mxu0 %v147
    %428 = vmatprep.subr.mxu0 0.0
    %429 = vmatpush1.msra.mxu0 %v148
    %430 = vmatprep.subr.mxu0 0.0
    %431 = vmatpush1.msra.mxu0 %v149
    %432 = vmatprep.subr.mxu0 0.0
    %433 = vmatpush1.msra.mxu0 %v150
    %434 = vmatprep.subr.mxu0 0.0
    %435 = vmatpush1.msra.mxu0 %v151
    %436 = vmatprep.subr.mxu0 0.0
    %437 = vmatpush1.msra.mxu0 %v152
    %438 = vmatprep.subr.mxu0 0.0
    %439 = vmatpush1.msra.mxu0 %v153
    %440 = vmatprep.subr.mxu0 0.0
    %441 = vmatpush1.msra.mxu0 %v154
    %442 = vmatprep.subr.mxu0 0.0
    %443 = vmatpush1.msra.mxu0 %v155
    %444 = vmatprep.subr.mxu0 0.0
    %445 = vmatpush1.msra.mxu0 %v156
    %446 = vmatprep.subr.mxu0 0.0
    %447 = vmatpush1.msra.mxu0 %v157
    %448 = vmatprep.mubr.f32.mxu0 %v357
    %449 = vmatmul.mubr.f32.gmra.mrb[0].mxu0 %v349
    %v450 = vpop.f32.mrb[0].mxu0
    %v451 = vadd.f32 %v337, %v450
    %v452 = vpop.f32.mrb[0].mxu0
    %453 = vdwg.mxu0
    %454 = vmatprep.subr.mxu0 0.0
    %455 = vmatpush1.msra.mxu0 %v158
    %456 = vmatprep.subr.mxu0 0.0
    %457 = vmatpush1.msra.mxu0 %v159
    %458 = vmatprep.subr.mxu0 0.0
    %459 = vmatpush1.msra.mxu0 %v160
    %460 = vmatprep.subr.mxu0 0.0
    %461 = vmatpush1.msra.mxu0 %v161
    %462 = vmatprep.subr.mxu0 0.0
    %463 = vmatpush1.msra.mxu0 %v162
    %464 = vmatprep.subr.mxu0 0.0
    %465 = vmatpush1.msra.mxu0 %v163
    %466 = vmatprep.subr.mxu0 0.0
    %467 = vmatpush1.msra.mxu0 %v164
    %468 = vmatprep.subr.mxu0 0.0
    %469 = vmatpush1.msra.mxu0 %v165
    %470 = vmatprep.subr.mxu0 0.0
    %471 = vmatpush1.msra.mxu0 %v166
    %472 = vmatprep.subr.mxu0 0.0
    %473 = vmatpush1.msra.mxu0 %v167
    %474 = vmatprep.subr.mxu0 0.0
    %475 = vmatpush1.msra.mxu0 %v168
    %476 = vmatprep.subr.mxu0 0.0
    %477 = vmatpush1.msra.mxu0 %v169
    %478 = vmatprep.subr.mxu0 0.0
    %479 = vmatpush1.msra.mxu0 %v170
    %480 = vmatprep.subr.mxu0 0.0
    %481 = vmatpush1.msra.mxu0 %v171
    %482 = vmatprep.subr.mxu0 0.0
    %483 = vmatpush1.msra.mxu0 %v172
    %484 = vmatprep.subr.mxu0 0.0
    %485 = vmatpush1.msra.mxu0 %v173
    %486 = vmatprep.subr.mxu0 0.0
    %487 = vmatpush1.msra.mxu0 %v174
    %488 = vmatprep.subr.mxu0 0.0
    %489 = vmatpush1.msra.mxu0 %v175
    %490 = vmatprep.subr.mxu0 0.0
    %491 = vmatpush1.msra.mxu0 %v176
    %492 = vmatprep.subr.mxu0 0.0
    %493 = vmatpush1.msra.mxu0 %v177
    %494 = vmatprep.subr.mxu0 0.0
    %495 = vmatpush1.msra.mxu0 %v178
    %496 = vmatprep.subr.mxu0 0.0
    %497 = vmatpush1.msra.mxu0 %v179
    %498 = vmatprep.subr.mxu0 0.0
    %499 = vmatpush1.msra.mxu0 %v180
    %500 = vmatprep.subr.mxu0 0.0
    %501 = vmatpush1.msra.mxu0 %v181
    %502 = vmatprep.subr.mxu0 0.0
    %503 = vmatpush1.msra.mxu0 %v182
    %504 = vmatprep.subr.mxu0 0.0
    %505 = vmatpush1.msra.mxu0 %v183
    %506 = vmatprep.subr.mxu0 0.0
    %507 = vmatpush1.msra.mxu0 %v184
    %508 = vmatprep.subr.mxu0 0.0
    %509 = vmatpush1.msra.mxu0 %v185
    %510 = vmatprep.subr.mxu0 0.0
    %511 = vmatpush1.msra.mxu0 %v186
    %512 = vmatprep.subr.mxu0 0.0
    %513 = vmatpush1.msra.mxu0 %v187
    %514 = vmatprep.subr.mxu0 0.0
    %515 = vmatpush1.msra.mxu0 %v188
    %516 = vmatprep.subr.mxu0 0.0
    %517 = vmatpush1.msra.mxu0 %v189
    %518 = vmatprep.mubr.f32.mxu0 %v358
    %519 = vmatmul.mubr.f32.gmra.mrb[0].mxu0 %v356
    %v520 = vpop.f32.mrb[0].mxu0
    %v521 = vadd.f32 %v451, %v520
    %v522 = vpop.f32.mrb[0].mxu0
    %523 = vdwg.mxu0
    %524 = vmatprep.subr.mxu0 0.0
    %525 = vmatpush1.msra.mxu0 %v190
    %526 = vmatprep.subr.mxu0 0.0
    %527 = vmatpush1.msra.mxu0 %v191
    %528 = vmatprep.subr.mxu0 0.0
    %529 = vmatpush1.msra.mxu0 %v192
    %530 = vmatprep.subr.mxu0 0.0
    %531 = vmatpush1.msra.mxu0 %v193
    %532 = vmatprep.subr.mxu0 0.0
    %533 = vmatpush1.msra.mxu0 %v194
    %534 = vmatprep.subr.mxu0 0.0
    %535 = vmatpush1.msra.mxu0 %v195
    %536 = vmatprep.subr.mxu0 0.0
    %537 = vmatpush1.msra.mxu0 %v196
    %538 = vmatprep.subr.mxu0 0.0
    %539 = vmatpush1.msra.mxu0 %v197
    %540 = vmatprep.subr.mxu0 0.0
    %541 = vmatpush1.msra.mxu0 %v198
    %542 = vmatprep.subr.mxu0 0.0
    %543 = vmatpush1.msra.mxu0 %v199
    %544 = vmatprep.subr.mxu0 0.0
    %545 = vmatpush1.msra.mxu0 %v200
    %546 = vmatprep.subr.mxu0 0.0
    %547 = vmatpush1.msra.mxu0 %v201
    %548 = vmatprep.subr.mxu0 0.0
    %549 = vmatpush1.msra.mxu0 %v202
    %550 = vmatprep.subr.mxu0 0.0
    %551 = vmatpush1.msra.mxu0 %v203
    %552 = vmatprep.subr.mxu0 0.0
    %553 = vmatpush1.msra.mxu0 %v204
    %554 = vmatprep.subr.mxu0 0.0
    %555 = vmatpush1.msra.mxu0 %v205
    %556 = vmatprep.subr.mxu0 0.0
    %557 = vmatpush1.msra.mxu0 %v206
    %558 = vmatprep.subr.mxu0 0.0
    %559 = vmatpush1.msra.mxu0 %v207
    %560 = vmatprep.subr.mxu0 0.0
    %561 = vmatpush1.msra.mxu0 %v208
    %562 = vmatprep.subr.mxu0 0.0
    %563 = vmatpush1.msra.mxu0 %v209
    %564 = vmatprep.subr.mxu0 0.0
    %565 = vmatpush1.msra.mxu0 %v210
    %566 = vmatprep.subr.mxu0 0.0
    %567 = vmatpush1.msra.mxu0 %v211
    %568 = vmatprep.subr.mxu0 0.0
    %569 = vmatpush1.msra.mxu0 %v212
    %570 = vmatprep.subr.mxu0 0.0
    %571 = vmatpush1.msra.mxu0 %v213
    %572 = vmatprep.subr.mxu0 0.0
    %573 = vmatpush1.msra.mxu0 %v214
    %574 = vmatprep.subr.mxu0 0.0
    %575 = vmatpush1.msra.mxu0 %v215
    %576 = vmatprep.subr.mxu0 0.0
    %577 = vmatpush1.msra.mxu0 %v216
    %578 = vmatprep.subr.mxu0 0.0
    %579 = vmatpush1.msra.mxu0 %v217
    %580 = vmatprep.subr.mxu0 0.0
    %581 = vmatpush1.msra.mxu0 %v218
    %582 = vmatprep.subr.mxu0 0.0
    %583 = vmatpush1.msra.mxu0 %v219
    %584 = vmatprep.subr.mxu0 0.0
    %585 = vmatpush1.msra.mxu0 %v220
    %586 = vmatprep.subr.mxu0 0.0
    %587 = vmatpush1.msra.mxu0 %v221
    %588 = vmatprep.mubr.f32.mxu0 %v374
    %589 = vmatmul.mubr.f32.gmra.mrb[0].mxu0 %v366
    %v590 = vpop.f32.mrb[0].mxu0
    %v591 = vadd.f32 %v521, %v590
    %v592 = vpop.f32.mrb[0].mxu0
    %593 = vdwg.mxu0
    %594 = vmatprep.subr.mxu0 0.0
    %595 = vmatpush1.msra.mxu0 %v222
    %596 = vmatprep.subr.mxu0 0.0
    %597 = vmatpush1.msra.mxu0 %v223
    %598 = vmatprep.subr.mxu0 0.0
    %599 = vmatpush1.msra.mxu0 %v224
    %600 = vmatprep.subr.mxu0 0.0
    %601 = vmatpush1.msra.mxu0 %v225
    %602 = vmatprep.subr.mxu0 0.0
    %603 = vmatpush1.msra.mxu0 %v226
    %604 = vmatprep.subr.mxu0 0.0
    %605 = vmatpush1.msra.mxu0 %v227
    %606 = vmatprep.subr.mxu0 0.0
    %607 = vmatpush1.msra.mxu0 %v228
    %608 = vmatprep.subr.mxu0 0.0
    %609 = vmatpush1.msra.mxu0 %v229
    %610 = vmatprep.subr.mxu0 0.0
    %611 = vmatpush1.msra.mxu0 %v230
    %612 = vmatprep.subr.mxu0 0.0
    %613 = vmatpush1.msra.mxu0 %v231
    %614 = vmatprep.subr.mxu0 0.0
    %615 = vmatpush1.msra.mxu0 %v232
    %616 = vmatprep.subr.mxu0 0.0
    %617 = vmatpush1.msra.mxu0 %v233
    %618 = vmatprep.subr.mxu0 0.0
    %619 = vmatpush1.msra.mxu0 %v234
    %620 = vmatprep.subr.mxu0 0.0
    %621 = vmatpush1.msra.mxu0 %v235
    %622 = vmatprep.subr.mxu0 0.0
    %623 = vmatpush1.msra.mxu0 %v236
    %624 = vmatprep.subr.mxu0 0.0
    %625 = vmatpush1.msra.mxu0 %v237
    %626 = vmatprep.subr.mxu0 0.0
    %627 = vmatpush1.msra.mxu0 %v238
    %628 = vmatprep.subr.mxu0 0.0
    %629 = vmatpush1.msra.mxu0 %v239
    %630 = vmatprep.subr.mxu0 0.0
    %631 = vmatpush1.msra.mxu0 %v240
    %632 = vmatprep.subr.mxu0 0.0
    %633 = vmatpush1.msra.mxu0 %v241
    %634 = vmatprep.subr.mxu0 0.0
    %635 = vmatpush1.msra.mxu0 %v242
    %636 = vmatprep.subr.mxu0 0.0
    %637 = vmatpush1.msra.mxu0 %v243
    %638 = vmatprep.subr.mxu0 0.0
    %639 = vmatpush1.msra.mxu0 %v244
    %640 = vmatprep.subr.mxu0 0.0
    %641 = vmatpush1.msra.mxu0 %v245
    %642 = vmatprep.subr.mxu0 0.0
    %643 = vmatpush1.msra.mxu0 %v246
    %644 = vmatprep.subr.mxu0 0.0
    %645 = vmatpush1.msra.mxu0 %v247
    %646 = vmatprep.subr.mxu0 0.0
    %647 = vmatpush1.msra.mxu0 %v248
    %648 = vmatprep.subr.mxu0 0.0
    %649 = vmatpush1.msra.mxu0 %v249
    %650 = vmatprep.subr.mxu0 0.0
    %651 = vmatpush1.msra.mxu0 %v250
    %652 = vmatprep.subr.mxu0 0.0
    %653 = vmatpush1.msra.mxu0 %v251
    %654 = vmatprep.subr.mxu0 0.0
    %655 = vmatpush1.msra.mxu0 %v252
    %656 = vmatprep.subr.mxu0 0.0
    %657 = vmatpush1.msra.mxu0 %v253
    %658 = vmatprep.mubr.f32.mxu0 %v375
    %659 = vmatmul.mubr.f32.gmra.mrb[0].mxu0 %v373
    %v660 = vpop.f32.mrb[0].mxu0
    %v661 = vadd.f32 %v591, %v660
    %v662 = vpop.f32.mrb[0].mxu0
    %663 = vdwg.mxu0
    %v664 = vld [vmem:[%s5] sm:$0xff]
    %vm665 = vcmask 64512
    %v667 = vsel %vm665, %v125, 0
    %669 = vmatprep.subr.mxu0 0.0
    %670 = vmatpush1.msra.mxu0 %v664
    %671 = vmatprep.subr.mxu0 0.0
    %672 = vmatpush1.msra.mxu0 0.0
    %673 = vmatprep.subr.mxu0 0.0
    %674 = vmatpush1.msra.mxu0 0.0
    %675 = vmatprep.subr.mxu0 0.0
    %676 = vmatpush1.msra.mxu0 0.0
    %677 = vmatprep.subr.mxu0 0.0
    %678 = vmatpush1.msra.mxu0 0.0
    %679 = vmatprep.subr.mxu0 0.0
    %680 = vmatpush1.msra.mxu0 0.0
    %681 = vmatprep.subr.mxu0 0.0
    %682 = vmatpush1.msra.mxu0 0.0
    %683 = vmatprep.subr.mxu0 0.0
    %684 = vmatpush1.msra.mxu0 0.0
    %685 = vmatprep.subr.mxu0 0.0
    %686 = vmatpush1.msra.mxu0 0.0
    %687 = vmatprep.subr.mxu0 0.0
    %688 = vmatpush1.msra.mxu0 0.0
    %689 = vmatprep.subr.mxu0 0.0
    %690 = vmatpush1.msra.mxu0 0.0
    %691 = vmatprep.subr.mxu0 0.0
    %692 = vmatpush1.msra.mxu0 0.0
    %693 = vmatprep.subr.mxu0 0.0
    %694 = vmatpush1.msra.mxu0 0.0
    %695 = vmatprep.subr.mxu0 0.0
    %696 = vmatpush1.msra.mxu0 0.0
    %697 = vmatprep.subr.mxu0 0.0
    %698 = vmatpush1.msra.mxu0 0.0
    %699 = vmatprep.subr.mxu0 0.0
    %700 = vmatpush1.msra.mxu0 0.0
    %701 = vmatprep.subr.mxu0 0.0
    %702 = vmatpush1.msra.mxu0 0.0
    %703 = vmatprep.subr.mxu0 0.0
    %704 = vmatpush1.msra.mxu0 0.0
    %705 = vmatprep.subr.mxu0 0.0
    %706 = vmatpush1.msra.mxu0 0.0
    %707 = vmatprep.subr.mxu0 0.0
    %708 = vmatpush1.msra.mxu0 0.0
    %709 = vmatprep.subr.mxu0 0.0
    %710 = vmatpush1.msra.mxu0 0.0
    %711 = vmatprep.subr.mxu0 0.0
    %712 = vmatpush1.msra.mxu0 0.0
    %713 = vmatprep.subr.mxu0 0.0
    %714 = vmatpush1.msra.mxu0 0.0
    %715 = vmatprep.subr.mxu0 0.0
    %716 = vmatpush1.msra.mxu0 0.0
    %717 = vmatprep.subr.mxu0 0.0
    %718 = vmatpush1.msra.mxu0 0.0
    %719 = vmatprep.subr.mxu0 0.0
    %720 = vmatpush1.msra.mxu0 0.0
    %721 = vmatprep.subr.mxu0 0.0
    %722 = vmatpush1.msra.mxu0 0.0
    %723 = vmatprep.subr.mxu0 0.0
    %724 = vmatpush1.msra.mxu0 0.0
    %725 = vmatprep.subr.mxu0 0.0
    %726 = vmatpush1.msra.mxu0 0.0
    %727 = vmatprep.subr.mxu0 0.0
    %728 = vmatpush1.msra.mxu0 0.0
    %729 = vmatprep.subr.mxu0 0.0
    %730 = vmatpush1.msra.mxu0 0.0
    %731 = vmatprep.subr.mxu0 0.0
    %732 = vmatpush1.msra.mxu0 0.0
    %733 = vmatprep.mubr.f32.mxu0 0.0
    %734 = vmatmul.mubr.f32.gmra.mrb[0].mxu0 %v667
    %v735 = vpop.f32.mrb[0].mxu0
    %v736 = vadd.f32 0.0, %v735
    %v737 = vpop.f32.mrb[0].mxu0
    %738 = vdwg.mxu0
    %v739 = vadd.f32 %v661, %v736
    %v740 = vld [vmem:[#allocation8] sm:$0xff]
    %v741 = vld [vmem:[#allocation8 + $0x8] sm:$0xff]
    %v742 = vld [vmem:[#allocation8 + $0x10] sm:$0xff]
    %v743 = vld [vmem:[#allocation8 + $0x18] sm:$0xff]
    %v744 = vld [vmem:[#allocation8 + $0x20] sm:$0xff]
    %v745 = vld [vmem:[#allocation8 + $0x28] sm:$0xff]
    %v746 = vld [vmem:[#allocation8 + $0x30] sm:$0xff]
    %v747 = vld [vmem:[#allocation8 + $0x38] sm:$0xff]
    %v748 = vld [vmem:[#allocation8 + $0x40] sm:$0xff]
    %v749 = vld [vmem:[#allocation8 + $0x48] sm:$0xff]
    %v750 = vld [vmem:[#allocation8 + $0x50] sm:$0xff]
    %v751 = vld [vmem:[#allocation8 + $0x58] sm:$0xff]
    %v752 = vld [vmem:[#allocation8 + $0x60] sm:$0xff]
    %v753 = vld [vmem:[#allocation8 + $0x68] sm:$0xff]
    %v754 = vld [vmem:[#allocation8 + $0x70] sm:$0xff]
    %v755 = vld [vmem:[#allocation8 + $0x78] sm:$0xff]
    %v756 = vld [vmem:[%s7] sm:$0x1]
    %v758 = vlaneseq
    %v759 = vshrl.u32 %v758, 7
    %v760 = vsub.s32 0, %v759
    %v761 = vrot.slane %v756, %v760
    %763 = vmatprep.subr.mxu0 0.0
    %764 = vmatpush1.msra.mxu0 %v740
    %765 = vmatprep.subr.mxu0 0.0
    %766 = vmatpush1.msra.mxu0 %v741
    %767 = vmatprep.subr.mxu0 0.0
    %768 = vmatpush1.msra.mxu0 %v742
    %769 = vmatprep.subr.mxu0 0.0
    %770 = vmatpush1.msra.mxu0 %v743
    %771 = vmatprep.subr.mxu0 0.0
    %772 = vmatpush1.msra.mxu0 %v744
    %773 = vmatprep.subr.mxu0 0.0
    %774 = vmatpush1.msra.mxu0 %v745
    %775 = vmatprep.subr.mxu0 0.0
    %776 = vmatpush1.msra.mxu0 %v746
    %777 = vmatprep.subr.mxu0 0.0
    %778 = vmatpush1.msra.mxu0 %v747
    %779 = vmatprep.subr.mxu0 0.0
    %780 = vmatpush1.msra.mxu0 %v748
    %781 = vmatprep.subr.mxu0 0.0
    %782 = vmatpush1.msra.mxu0 %v749
    %783 = vmatprep.subr.mxu0 0.0
    %784 = vmatpush1.msra.mxu0 %v750
    %785 = vmatprep.subr.mxu0 0.0
    %786 = vmatpush1.msra.mxu0 %v751
    %787 = vmatprep.subr.mxu0 0.0
    %788 = vmatpush1.msra.mxu0 %v752
    %789 = vmatprep.subr.mxu0 0.0
    %790 = vmatpush1.msra.mxu0 %v753
    %791 = vmatprep.subr.mxu0 0.0
    %792 = vmatpush1.msra.mxu0 %v754
    %793 = vmatprep.subr.mxu0 0.0
    %794 = vmatpush1.msra.mxu0 %v755
    %795 = vmatprep.subr.mxu0 0.0
    %796 = vmatpush1.msra.mxu0 0.0
    %797 = vmatprep.subr.mxu0 0.0
    %798 = vmatpush1.msra.mxu0 0.0
    %799 = vmatprep.subr.mxu0 0.0
    %800 = vmatpush1.msra.mxu0 0.0
    %801 = vmatprep.subr.mxu0 0.0
    %802 = vmatpush1.msra.mxu0 0.0
    %803 = vmatprep.subr.mxu0 0.0
    %804 = vmatpush1.msra.mxu0 0.0
    %805 = vmatprep.subr.mxu0 0.0
    %806 = vmatpush1.msra.mxu0 0.0
    %807 = vmatprep.subr.mxu0 0.0
    %808 = vmatpush1.msra.mxu0 0.0
    %809 = vmatprep.subr.mxu0 0.0
    %810 = vmatpush1.msra.mxu0 0.0
    %811 = vmatprep.subr.mxu0 0.0
    %812 = vmatpush1.msra.mxu0 0.0
    %813 = vmatprep.subr.mxu0 0.0
    %814 = vmatpush1.msra.mxu0 0.0
    %815 = vmatprep.subr.mxu0 0.0
    %816 = vmatpush1.msra.mxu0 0.0
    %817 = vmatprep.subr.mxu0 0.0
    %818 = vmatpush1.msra.mxu0 0.0
    %819 = vmatprep.subr.mxu0 0.0
    %820 = vmatpush1.msra.mxu0 0.0
    %821 = vmatprep.subr.mxu0 0.0
    %822 = vmatpush1.msra.mxu0 0.0
    %823 = vmatprep.subr.mxu0 0.0
    %824 = vmatpush1.msra.mxu0 0.0
    %825 = vmatprep.subr.mxu0 0.0
    %826 = vmatpush1.msra.mxu0 0.0
    %827 = vmatprep.mubr.f32.mxu0 0.0
    %828 = vmatmul.mubr.f32.gmra.mrb[0].mxu0 %v739
    %v829 = vpop.f32.mrb[0].mxu0
    %v830 = vadd.f32 %v761, %v829
    %v831 = vpop.f32.mrb[0].mxu0
    %832 = vdwg.mxu0
    %v833 = vmax.f32 %v830, 0.0
    %v834 = vld [vmem:[#allocation10] sm:$0xff]
    %v835 = vld [vmem:[#allocation10 + $0x8] sm:$0xff]
    %v836 = vld [vmem:[#allocation10 + $0x10] sm:$0xff]
    %v837 = vld [vmem:[#allocation10 + $0x18] sm:$0xff]
    %v838 = vld [vmem:[#allocation10 + $0x20] sm:$0xff]
    %v839 = vld [vmem:[#allocation10 + $0x28] sm:$0xff]
    %v840 = vld [vmem:[#allocation10 + $0x30] sm:$0xff]
    %v841 = vld [vmem:[#allocation10 + $0x38] sm:$0xff]
    %v842 = vld [vmem:[#allocation10 + $0x40] sm:$0xff]
    %v843 = vld [vmem:[#allocation10 + $0x48] sm:$0xff]
    %v844 = vld [vmem:[#allocation10 + $0x50] sm:$0xff]
    %v845 = vld [vmem:[#allocation10 + $0x58] sm:$0xff]
    %v846 = vld [vmem:[#allocation10 + $0x60] sm:$0xff]
    %v847 = vld [vmem:[#allocation10 + $0x68] sm:$0xff]
    %v848 = vld [vmem:[#allocation10 + $0x70] sm:$0xff]
    %v849 = vld [vmem:[#allocation10 + $0x78] sm:$0xff]
    %v850 = vld [vmem:[%s9] sm:$0x1]
    %v852 = vlaneseq
    %v853 = vshrl.u32 %v852, 7
    %v854 = vsub.s32 0, %v853
    %v855 = vrot.slane %v850, %v854
    %857 = vmatprep.subr.mxu0 0.0
    %858 = vmatpush1.msra.mxu0 %v834
    %859 = vmatprep.subr.mxu0 0.0
    %860 = vmatpush1.msra.mxu0 %v835
    %861 = vmatprep.subr.mxu0 0.0
    %862 = vmatpush1.msra.mxu0 %v836
    %863 = vmatprep.subr.mxu0 0.0
    %864 = vmatpush1.msra.mxu0 %v837
    %865 = vmatprep.subr.mxu0 0.0
    %866 = vmatpush1.msra.mxu0 %v838
    %867 = vmatprep.subr.mxu0 0.0
    %868 = vmatpush1.msra.mxu0 %v839
    %869 = vmatprep.subr.mxu0 0.0
    %870 = vmatpush1.msra.mxu0 %v840
    %871 = vmatprep.subr.mxu0 0.0
    %872 = vmatpush1.msra.mxu0 %v841
    %873 = vmatprep.subr.mxu0 0.0
    %874 = vmatpush1.msra.mxu0 %v842
    %875 = vmatprep.subr.mxu0 0.0
    %876 = vmatpush1.msra.mxu0 %v843
    %877 = vmatprep.subr.mxu0 0.0
    %878 = vmatpush1.msra.mxu0 %v844
    %879 = vmatprep.subr.mxu0 0.0
    %880 = vmatpush1.msra.mxu0 %v845
    %881 = vmatprep.subr.mxu0 0.0
    %882 = vmatpush1.msra.mxu0 %v846
    %883 = vmatprep.subr.mxu0 0.0
    %884 = vmatpush1.msra.mxu0 %v847
    %885 = vmatprep.subr.mxu0 0.0
    %886 = vmatpush1.msra.mxu0 %v848
    %887 = vmatprep.subr.mxu0 0.0
    %888 = vmatpush1.msra.mxu0 %v849
    %889 = vmatprep.subr.mxu0 0.0
    %890 = vmatpush1.msra.mxu0 0.0
    %891 = vmatprep.subr.mxu0 0.0
    %892 = vmatpush1.msra.mxu0 0.0
    %893 = vmatprep.subr.mxu0 0.0
    %894 = vmatpush1.msra.mxu0 0.0
    %895 = vmatprep.subr.mxu0 0.0
    %896 = vmatpush1.msra.mxu0 0.0
    %897 = vmatprep.subr.mxu0 0.0
    %898 = vmatpush1.msra.mxu0 0.0
    %899 = vmatprep.subr.mxu0 0.0
    %900 = vmatpush1.msra.mxu0 0.0
    %901 = vmatprep.subr.mxu0 0.0
    %902 = vmatpush1.msra.mxu0 0.0
    %903 = vmatprep.subr.mxu0 0.0
    %904 = vmatpush1.msra.mxu0 0.0
    %905 = vmatprep.subr.mxu0 0.0
    %906 = vmatpush1.msra.mxu0 0.0
    %907 = vmatprep.subr.mxu0 0.0
    %908 = vmatpush1.msra.mxu0 0.0
    %909 = vmatprep.subr.mxu0 0.0
    %910 = vmatpush1.msra.mxu0 0.0
    %911 = vmatprep.subr.mxu0 0.0
    %912 = vmatpush1.msra.mxu0 0.0
    %913 = vmatprep.subr.mxu0 0.0
    %914 = vmatpush1.msra.mxu0 0.0
    %915 = vmatprep.subr.mxu0 0.0
    %916 = vmatpush1.msra.mxu0 0.0
    %917 = vmatprep.subr.mxu0 0.0
    %918 = vmatpush1.msra.mxu0 0.0
    %919 = vmatprep.subr.mxu0 0.0
    %920 = vmatpush1.msra.mxu0 0.0
    %921 = vmatprep.mubr.f32.mxu0 0.0
    %922 = vmatmul.mubr.f32.gmra.mrb[0].mxu0 %v833
    %v923 = vpop.f32.mrb[0].mxu0
    %v924 = vadd.f32 %v855, %v923
    %v925 = vpop.f32.mrb[0].mxu0
    %926 = vdwg.mxu0
    %v927 = vmax.f32 %v924, 0.0
    %v928 = vld [vmem:[#allocation11] sm:$0xff]
    %v929 = vld [vmem:[#allocation11 + $0x8] sm:$0xff]
    %v930 = vld [vmem:[#allocation11 + $0x10] sm:$0xff]
    %v931 = vld [vmem:[#allocation11 + $0x18] sm:$0xff]
    %v932 = vld [vmem:[#allocation11 + $0x20] sm:$0xff]
    %v933 = vld [vmem:[#allocation11 + $0x28] sm:$0xff]
    %v934 = vld [vmem:[#allocation11 + $0x30] sm:$0xff]
    %v935 = vld [vmem:[#allocation11 + $0x38] sm:$0xff]
    %v936 = vld [vmem:[#allocation11 + $0x40] sm:$0xff]
    %v937 = vld [vmem:[#allocation11 + $0x48] sm:$0xff]
    %v938 = vld [vmem:[#allocation11 + $0x50] sm:$0xff]
    %v939 = vld [vmem:[#allocation11 + $0x58] sm:$0xff]
    %v940 = vld [vmem:[#allocation11 + $0x60] sm:$0xff]
    %v941 = vld [vmem:[#allocation11 + $0x68] sm:$0xff]
    %v942 = vld [vmem:[#allocation11 + $0x70] sm:$0xff]
    %v943 = vld [vmem:[#allocation11 + $0x78] sm:$0xff]
    %v944 = vld [vmem:[%s11] sm:$0x1]
    %v946 = vlaneseq
    %v947 = vshrl.u32 %v946, 7
    %v948 = vsub.s32 0, %v947
    %v949 = vrot.slane %v944, %v948
    %951 = vmatprep.subr.mxu0 0.0
    %952 = vmatpush1.msra.mxu0 %v928
    %953 = vmatprep.subr.mxu0 0.0
    %954 = vmatpush1.msra.mxu0 %v929
    %955 = vmatprep.subr.mxu0 0.0
    %956 = vmatpush1.msra.mxu0 %v930
    %957 = vmatprep.subr.mxu0 0.0
    %958 = vmatpush1.msra.mxu0 %v931
    %959 = vmatprep.subr.mxu0 0.0
    %960 = vmatpush1.msra.mxu0 %v932
    %961 = vmatprep.subr.mxu0 0.0
    %962 = vmatpush1.msra.mxu0 %v933
    %963 = vmatprep.subr.mxu0 0.0
    %964 = vmatpush1.msra.mxu0 %v934
    %965 = vmatprep.subr.mxu0 0.0
    %966 = vmatpush1.msra.mxu0 %v935
    %967 = vmatprep.subr.mxu0 0.0
    %968 = vmatpush1.msra.mxu0 %v936
    %969 = vmatprep.subr.mxu0 0.0
    %970 = vmatpush1.msra.mxu0 %v937
    %971 = vmatprep.subr.mxu0 0.0
    %972 = vmatpush1.msra.mxu0 %v938
    %973 = vmatprep.subr.mxu0 0.0
    %974 = vmatpush1.msra.mxu0 %v939
    %975 = vmatprep.subr.mxu0 0.0
    %976 = vmatpush1.msra.mxu0 %v940
    %977 = vmatprep.subr.mxu0 0.0
    %978 = vmatpush1.msra.mxu0 %v941
    %979 = vmatprep.subr.mxu0 0.0
    %980 = vmatpush1.msra.mxu0 %v942
    %981 = vmatprep.subr.mxu0 0.0
    %982 = vmatpush1.msra.mxu0 %v943
    %983 = vmatprep.subr.mxu0 0.0
    %984 = vmatpush1.msra.mxu0 0.0
    %985 = vmatprep.subr.mxu0 0.0
    %986 = vmatpush1.msra.mxu0 0.0
    %987 = vmatprep.subr.mxu0 0.0
    %988 = vmatpush1.msra.mxu0 0.0
    %989 = vmatprep.subr.mxu0 0.0
    %990 = vmatpush1.msra.mxu0 0.0
    %991 = vmatprep.subr.mxu0 0.0
    %992 = vmatpush1.msra.mxu0 0.0
    %993 = vmatprep.subr.mxu0 0.0
    %994 = vmatpush1.msra.mxu0 0.0
    %995 = vmatprep.subr.mxu0 0.0
    %996 = vmatpush1.msra.mxu0 0.0
    %997 = vmatprep.subr.mxu0 0.0
    %998 = vmatpush1.msra.mxu0 0.0
    %999 = vmatprep.subr.mxu0 0.0
    %1000 = vmatpush1.msra.mxu0 0.0
    %1001 = vmatprep.subr.mxu0 0.0
    %1002 = vmatpush1.msra.mxu0 0.0
    %1003 = vmatprep.subr.mxu0 0.0
    %1004 = vmatpush1.msra.mxu0 0.0
    %1005 = vmatprep.subr.mxu0 0.0
    %1006 = vmatpush1.msra.mxu0 0.0
    %1007 = vmatprep.subr.mxu0 0.0
    %1008 = vmatpush1.msra.mxu0 0.0
    %1009 = vmatprep.subr.mxu0 0.0
    %1010 = vmatpush1.msra.mxu0 0.0
    %1011 = vmatprep.subr.mxu0 0.0
    %1012 = vmatpush1.msra.mxu0 0.0
    %1013 = vmatprep.subr.mxu0 0.0
    %1014 = vmatpush1.msra.mxu0 0.0
    %1015 = vmatprep.mubr.f32.mxu0 0.0
    %1016 = vmatmul.mubr.f32.gmra.mrb[0].mxu0 %v927
    %v1017 = vpop.f32.mrb[0].mxu0
    %v1018 = vadd.f32 %v949, %v1017
    %v1019 = vpop.f32.mrb[0].mxu0
    %1020 = vdwg.mxu0
    %1021 = vst [vmem:[#allocation13] sm:$0x3] %v1018
    // Predicated region
    $region74: #{tpu_custom_call.1} parent=1 // pred_check
      _
    $region75: #{tpu_custom_call.1} parent=1 // pred_check_branch
      %1023 = sbr.rel (0) target = $region77
    $region76: #{tpu_custom_call.1} parent=1 // pred_region
      %s1025 = ssub.s32 32, 32
      %1026 = vsyncadd [#allocation4], %s1025
      %s1028 = sshll.u32 [#allocation13], 4
      %s1029 = int_to_ptr.vmem [resolvable:$true] %s1028
      %1031 = dma.vmem_to_hbm [thread:$0]  %s1029, 32, %s12, [#allocation4]
    $region77: #{tpu_custom_call.1} parent=1 // pred_fallthru
      _
    // Predicated region
    $region78: #{tpu_custom_call.1} parent=1 // pred_check
      _
    $region79: #{tpu_custom_call.1} parent=1 // pred_check_branch
      %1033 = sbr.rel (0) target = $region81
    $region80: #{tpu_custom_call.1} parent=1 // pred_region
      %1034 = dma.done [#allocation4], 32
    $region81: #{tpu_custom_call.1} parent=1 // pred_fallthru
      _
    %1035 = vsyncpa [#allocation3], 1
    %1036 = vsyncpa [#allocation6], 1
    %1037 = vsyncpa [#allocation9], 1
    %1038 = vsyncpa [#allocation12], 1
    %1039 = vsyncpa [#allocation4], 1

</llo_original>
